<compile_context>
chip_gen: v5e
topology: v5e:2x2
jax: 0.10.0
libtpu: 0.0.40
codegen_flags: <defaults>
</compile_context>

<pallas_src>
import jax
import jax.numpy as jnp
from jax.experimental import pallas as pl
from jax.experimental.pallas import tpu as pltpu

_LANE = 128      # vreg lane width (f32)
_SUBLANE = 8     # vreg sublane count (f32)


def _round_up(x: int, m: int) -> int:
    return ((x + m - 1) // m) * m


def _affine_kernel(wb_ref, x_ref, o_ref):
    # wb_ref: (2,) f32 SMEM  -> [w, b]   (scalar path)
    # x_ref : (block_rows, 128) f32 VMEM
    # o_ref : (block_rows, 128) f32 VMEM
    w = wb_ref[0]
    b = wb_ref[1]
    # Pure VPU fused multiply-add; scalar operands splat once per block.
    o_ref[...] = x_ref[...] * w + b


def linear_forward(x, weight, bias, *, block_rows: int = 2048):
    """Forward of nn.Linear(1, 1): x (N, 1) f32, weight (1, 1), bias (1,) -> (N, 1)."""
    assert x.ndim == 2 and x.shape[1] == 1, "module is Linear(1, 1): x must be (N, 1)"
    assert weight.shape == (1, 1) and bias.shape == (1,)
    assert block_rows % _SUBLANE == 0

    n = x.shape[0]
    x_flat = x.reshape(-1).astype(jnp.float32)                 # (N,)

    # Lane-dense 2-D view: pad N so the slab is (rows_padded, 128) with the
    # grid dividing rows_padded exactly (keeps every block (8,128)-aligned).
    rows = -(-n // _LANE)                                      # cdiv(N, 128)
    rows_aligned = _round_up(rows, _SUBLANE)
    blk = min(block_rows, rows_aligned)                        # multiple of 8
    rows_padded = _round_up(rows_aligned, blk)
    n_padded = rows_padded * _LANE

    x_pad = jnp.pad(x_flat, (0, n_padded - n))
    x2d = x_pad.reshape(rows_padded, _LANE)

    # Scalar parameters on the SMEM / scalar path.
    wb = jnp.stack([weight.reshape(()), bias.reshape(())]).astype(jnp.float32)  # (2,)

    grid = (rows_padded // blk,)
    out2d = pl.pallas_call(
        _affine_kernel,
        out_shape=jax.ShapeDtypeStruct((rows_padded, _LANE), jnp.float32),
        grid=grid,
        in_specs=[
            pl.BlockSpec(memory_space=pltpu.SMEM),              # wb: whole (2,) in SMEM
            pl.BlockSpec((blk, _LANE), lambda i: (i, 0)),       # x tile
        ],
        out_specs=pl.BlockSpec((blk, _LANE), lambda i: (i, 0)),  # out tile (lane-dense)
        compiler_params=pltpu.CompilerParams(
            dimension_semantics=("parallel",),
        ),
    )(wb, x2d)

    return out2d.reshape(-1)[:n].reshape(n, 1)


if __name__ == "__main__":
    key = jax.random.PRNGKey(0)
    k_w, k_b = jax.random.split(key, 2)

    # nn.Linear(1, 1) default init: U(-1/sqrt(in), 1/sqrt(in)) = U(-1, 1).
    weight = jax.random.uniform(k_w, (1, 1), jnp.float32, minval=-1.0, maxval=1.0)
    bias = jax.random.uniform(k_b, (1,), jnp.float32, minval=-1.0, maxval=1.0)

    # Input exactly as in the reference script: linspace(-1, 1, 100) unsqueezed.
    n = 100
    x = jnp.linspace(-1.0, 1.0, n, dtype=jnp.float32).reshape(n, 1)

    out = linear_forward(x, weight, bias)
    out = jax.block_until_ready(out)

    ref = x @ weight.T + bias
    assert out.shape == (n, 1)
    assert jnp.allclose(out, ref, atol=1e-6), "mismatch vs reference (single block)"

    # Second check exercising a multi-step grid (small block_rows forces 5 tiles).
    n2 = 5000
    x2 = jax.random.uniform(key, (n2, 1), jnp.float32, minval=-1.0, maxval=1.0)
    out2 = jax.block_until_ready(linear_forward(x2, weight, bias, block_rows=8))
    ref2 = x2 @ weight.T + bias
    assert out2.shape == (n2, 1)
    assert jnp.allclose(out2, ref2, atol=1e-6), "mismatch vs reference (tiled grid)"

    print("KERNEL_OK")
</pallas_src>

<mosaic_0001>
module attributes {stable_mosaic.version = 11 : i64} {
  func.func @_affine_kernel(%arg0: i32, %arg1: memref<2xf32, #tpu.memory_space<smem>>, %arg2: memref<8x128xf32, #tpu.memory_space<vmem>>, %arg3: memref<8x128xf32, #tpu.memory_space<vmem>>) attributes {dimension_semantics = [#tpu.dimension_semantics<parallel>], iteration_bounds = array<i64: 1>, scalar_prefetch = 0 : i64, scratch_operands = 0 : i64, tpu.core_type = #tpu.core_type<tc>, window_params = [{transform_indices = @transform_0, window_bounds = array<i64: 2>}, {transform_indices = @transform_1, window_bounds = array<i64: 8, 128>}, {transform_indices = @transform_2, window_bounds = array<i64: 8, 128>}]} {
    %c0 = arith.constant 0 : index
    %0 = memref.load %arg1[%c0] : memref<2xf32, #tpu.memory_space<smem>>
    %c1 = arith.constant 1 : index
    %1 = memref.load %arg1[%c1] : memref<2xf32, #tpu.memory_space<smem>>
    %c0_0 = arith.constant 0 : index
    %c0_1 = arith.constant 0 : index
    %2 = vector.load %arg2[%c0_0, %c0_1] : memref<8x128xf32, #tpu.memory_space<vmem>>, vector<8x128xf32>
    %3 = vector.broadcast %0 : f32 to vector<8x128xf32>
    %4 = arith.mulf %2, %3 : vector<8x128xf32>
    %5 = vector.broadcast %1 : f32 to vector<8x128xf32>
    %6 = arith.addf %4, %5 : vector<8x128xf32>
    %c0_2 = arith.constant 0 : index
    %c0_3 = arith.constant 0 : index
    %7 = vector.load %arg3[%c0_2, %c0_3] : memref<8x128xf32, #tpu.memory_space<vmem>>, vector<8x128xf32>
    tpu.vector_store %arg3[%c0_2, %c0_3], %6 {strides = array<i32>} : memref<8x128xf32, #tpu.memory_space<vmem>>, vector<8x128xf32>,
    return
  }
  func.func @transform_0(%arg0: i32) -> i32 {
    %c0_i32 = arith.constant 0 : i32
    %c0_i32_0 = arith.constant 0 : i32
    return %c0_i32 : i32
  }
  func.func @transform_1(%arg0: i32) -> (i32, i32) {
    %c0_i32 = arith.constant 0 : i32
    %c0_i32_0 = arith.constant 0 : i32
    return %arg0, %c0_i32 : i32, i32
  }
  func.func @transform_2(%arg0: i32) -> (i32, i32) {
    %c0_i32 = arith.constant 0 : i32
    %c0_i32_0 = arith.constant 0 : i32
    return %arg0, %c0_i32 : i32, i32
  }
}

</mosaic_0001>

<llo_original>
// kernel: tpu_custom_call.1
$region0: #{tpu_custom_call.1}
  #allocation0 [shape = 'u32[]', space=smem, size = 0x4, offset = 0x4, fixed_abs, tag = 'smem constant byte address 0x4 - core index']
  #allocation1 [shape = 'u32[72,128]{1,0:T(1,128)}', space=vmem, size = 0x9000, scoped, tag = 'internal scratch']
  %s0 = inlined_call_operand.hbm [shape: f32[2], index: 0, kind: input, shape index: {}]
  %s1 = inlined_call_operand.hbm [shape: f32[8,128], index: 1, kind: input, shape index: {}]
  %s2 = inlined_call_operand.hbm [shape: f32[8,128], index: 2, kind: output, shape index: {}]
  %s3 = sld [smem:[#allocation0]]
  $region26: #{tpu_custom_call.1} parent=0
    _
  %s5 = ssub.s32 1, %s3
  %s6 = scalar_select 0, %s5, %s3
  $region1: #{tpu_custom_call.1} parent=0
    #allocation2 [shape = 'u8[512]{0}', space=smem, size = 0x200, scoped, tag = 'input window, operand 0, single buffered']
    #allocation3 [shape = 's32[1]{0}', space=sflag, size = 0x4, scoped, tag = 'scoped memory for tpu_custom_call.1']
    #allocation4 [shape = 's32[1]{0}', space=sflag, size = 0x4, scoped, tag = 'scoped memory for tpu_custom_call.1']
    #allocation5 [shape = 's32[1]{0}', space=sflag, size = 0x4, scoped, tag = 'scoped memory for tpu_custom_call.1']
    #allocation6 [shape = 'u8[4096]{0}', space=vmem, size = 0x1000, scoped, tag = 'input window, operand 1, single buffered']
    #allocation7 [shape = 'u8[4096]{0}', space=vmem, size = 0x1000, scoped, tag = 'output window, operand 0, single buffered']
    %7 = vsyncpa [#allocation5], 0
    %8 = vsyncpa [#allocation3], 0
    %9 = vsyncpa [#allocation4], 0
    // Predicated region
    $region2: #{tpu_custom_call.1} parent=1 // pred_check
      _
    $region3: #{tpu_custom_call.1} parent=1 // pred_check_branch
      %11 = sbr.rel (0) target = $region5
    $region4: #{tpu_custom_call.1} parent=1 // pred_region
      %13 = vsyncadd [#allocation5], 0
      %s15 = sshll.u32 %s0, 4
      %s16 = int_to_ptr.hbm [resolvable:$true] %s15
      %18 = dma.hbm_to_smem %s16, 16, [#allocation2], [#allocation5]
    $region5: #{tpu_custom_call.1} parent=1 // pred_fallthru
      _
    // Predicated region
    $region6: #{tpu_custom_call.1} parent=1 // pred_check
      _
    $region7: #{tpu_custom_call.1} parent=1 // pred_check_branch
      %20 = sbr.rel (0) target = $region9
    $region8: #{tpu_custom_call.1} parent=1 // pred_region
      %22 = vsyncadd [#allocation3], 0
      %s24 = sshll.u32 %s1, 4
      %s25 = int_to_ptr.hbm [resolvable:$true] %s24
      %s26 = sshll.u32 [#allocation6], 4
      %s27 = int_to_ptr.vmem [resolvable:$true] %s26
      %29 = dma.hbm_to_vmem [thread:$0]  %s25, 128, %s27, [#allocation3]
    $region9: #{tpu_custom_call.1} parent=1 // pred_fallthru
      _
    // Predicated region
    $region10: #{tpu_custom_call.1} parent=1 // pred_check
      _
    $region11: #{tpu_custom_call.1} parent=1 // pred_check_branch
      %31 = sbr.rel (0) target = $region13
    $region12: #{tpu_custom_call.1} parent=1 // pred_region
      %33 = dma.done [#allocation5], 16
    $region13: #{tpu_custom_call.1} parent=1 // pred_fallthru
      _
    // Predicated region
    $region14: #{tpu_custom_call.1} parent=1 // pred_check
      _
    $region15: #{tpu_custom_call.1} parent=1 // pred_check_branch
      %35 = sbr.rel (0) target = $region17
    $region16: #{tpu_custom_call.1} parent=1 // pred_region
      %37 = dma.done [#allocation3], 128
    $region17: #{tpu_custom_call.1} parent=1 // pred_fallthru
      _
    %38 = sfence
    %s39 = sld [smem:[#allocation2]]
    %s40 = sld [smem:[#allocation2 + $0x1]]
    %v41 = vld [vmem:[#allocation6] sm:$0xff]
    %v42 = vstv %s39
    %v43 = vmul.f32 %v41, %v42
    %v44 = vstv %s40
    %v45 = vadd.f32 %v43, %v44
    %46 = vst [vmem:[#allocation7] sm:$0xff] %v45
    // Predicated region
    $region18: #{tpu_custom_call.1} parent=1 // pred_check
      _
    $region19: #{tpu_custom_call.1} parent=1 // pred_check_branch
      %48 = sbr.rel (0) target = $region21
    $region20: #{tpu_custom_call.1} parent=1 // pred_region
      %50 = vsyncadd [#allocation4], 0
      %s52 = sshll.u32 [#allocation7], 4
      %s53 = int_to_ptr.vmem [resolvable:$true] %s52
      %s54 = sshll.u32 %s2, 4
      %s55 = int_to_ptr.hbm [resolvable:$true] %s54
      %57 = dma.vmem_to_hbm [thread:$0]  %s53, 128, %s55, [#allocation4]
    $region21: #{tpu_custom_call.1} parent=1 // pred_fallthru
      _
    // Predicated region
    $region22: #{tpu_custom_call.1} parent=1 // pred_check
      _
    $region23: #{tpu_custom_call.1} parent=1 // pred_check_branch
      %59 = sbr.rel (0) target = $region25
    $region24: #{tpu_custom_call.1} parent=1 // pred_region
      %61 = dma.done [#allocation4], 128
    $region25: #{tpu_custom_call.1} parent=1 // pred_fallthru
      _
    %62 = vsyncpa [#allocation3], 1
    %63 = vsyncpa [#allocation4], 1
    %64 = vsyncpa [#allocation5], 1

</llo_original>
